<compile_context>
chip_gen: v5e
topology: v5e:2x2
jax: 0.10.0
libtpu: 0.0.40
codegen_flags: <defaults>
</compile_context>

<pallas_src>
import functools

import jax
import jax.numpy as jnp
from jax.experimental import pallas as pl
from jax.experimental.pallas import tpu as pltpu


def _round_up(x, m):
    return (x + m - 1) // m * m


def _pick_tile_m(m, target):
    """Largest multiple-of-8 divisor of m that is <= target, preferring a value
    that leaves >= 2 grid steps (so the parallel axis can use both TensorCores).
    Returns None when m is not a multiple of 8 (caller falls back to padding)."""
    if m % 8 != 0:
        return None
    hi = min(target, m)
    if m >= 16:
        hi = min(hi, m // 2)          # keep at least 2 grid steps
    hi -= hi % 8
    for cand in range(hi, 7, -8):
        if m % cand == 0:
            return cand
    return None


def _patch_embed_kernel(x_ref, w_ref, p_ref, o_ref, *, use_norm, eps):
    # x_ref: (TM, K) bf16 | w_ref: (K, E) bf16 | p_ref: (rows, E) f32
    # o_ref: (TM, E) out_dtype
    acc = jnp.dot(x_ref[...], w_ref[...], preferred_element_type=jnp.float32)
    acc = acc + p_ref[0:1, :]                          # Conv2d bias (f32)
    if use_norm:
        e = acc.shape[-1]
        inv_e = 1.0 / e
        mean = jnp.sum(acc, axis=-1, keepdims=True) * inv_e
        xc = acc - mean
        var = jnp.sum(xc * xc, axis=-1, keepdims=True) * inv_e   # two-pass
        acc = xc * jax.lax.rsqrt(var + eps)
        acc = acc * p_ref[1:2, :] + p_ref[2:3, :]      # LayerNorm gamma / beta
    o_ref[...] = acc.astype(o_ref.dtype)


def _resident_spec(shape):
    """BlockSpec for an operand that is identical for every grid step."""
    index_map = lambda i: (0,) * len(shape)
    try:
        # Single-buffer: no point double-buffering something never re-fetched.
        return pl.BlockSpec(shape, index_map, pipeline_mode=pl.Buffered(1))
    except Exception:
        return pl.BlockSpec(shape, index_map)


def patch_embed_2d(x, w, b, gamma=None, beta=None, *, patch_size=4, eps=1e-5,
                   tile_m=1024, out_dtype=jnp.bfloat16):
    """x: (B, C, H, W) NCHW.  w: (E, C, P, P) like nn.Conv2d.weight.  b: (E,).
    Returns (B, H//P, W//P, E) NHWC, matching PatchEmbed2D.forward."""
    B, C, H, W = x.shape
    E = w.shape[0]
    P = patch_size
    assert H % P == 0 and W % P == 0
    Hp, Wp = H // P, W // P
    M, K = B * Hp * Wp, C * P * P
    use_norm = gamma is not None

    # --- row tile: prefer an exact divisor of M (no pad, no output slice) ---
    TM = _pick_tile_m(M, tile_m)
    if TM is None:                              # M not a multiple of 8: pad rows
        TM = min(_round_up(M, 8), _round_up(tile_m, 8))
    M_pad = _round_up(M, TM)

    # --- host glue: patch extraction, (c, ph, pw)-major flatten, bf16 cast ---
    # One fused XLA transpose+convert pass; no K padding written to HBM.
    xp = x.reshape(B, C, Hp, P, Wp, P).transpose(0, 2, 4, 1, 3, 5).reshape(M, K)
    xp = xp.astype(jnp.bfloat16)
    if M_pad != M:
        xp = jnp.pad(xp, ((0, M_pad - M), (0, 0)))

    wm = w.reshape(E, K).T.astype(jnp.bfloat16)          # (K, E), resident

    bm = b.astype(jnp.float32).reshape(1, E)
    if use_norm:
        params = jnp.concatenate(
            [bm,
             gamma.astype(jnp.float32).reshape(1, E),
             beta.astype(jnp.float32).reshape(1, E)], axis=0)   # (3, E)
    else:
        params = bm                                              # (1, E)
    n_rows = params.shape[0]

    kernel = functools.partial(_patch_embed_kernel, use_norm=use_norm,
                               eps=float(eps))

    out_itemsize = jnp.dtype(out_dtype).itemsize
    cost = pl.CostEstimate(
        flops=2 * M_pad * K * E,
        transcendentals=(M_pad if use_norm else 0),
        bytes_accessed=(M_pad * K * 2 + K * E * 2 + n_rows * E * 4
                        + M_pad * E * out_itemsize))

    # VMEM budget: double-buffered X + out tiles, resident W/params, f32 headroom.
    vmem_bytes = (2 * TM * K * 2 + 2 * TM * E * out_itemsize
                  + K * E * 2 + n_rows * E * 4 + 2 * TM * E * 4)
    vmem_limit = int(min(max(vmem_bytes * 3 // 2, 32 * 2**20), 64 * 2**20))

    out = pl.pallas_call(
        kernel,
        out_shape=jax.ShapeDtypeStruct((M_pad, E), out_dtype),
        grid=(M_pad // TM,),
        in_specs=[
            pl.BlockSpec((TM, K), lambda i: (i, 0)),   # X row tile (pipelined)
            _resident_spec((K, E)),                    # W (resident, 1-buffered)
            _resident_spec((n_rows, E)),               # bias / gamma / beta
        ],
        out_specs=pl.BlockSpec((TM, E), lambda i: (i, 0)),
        compiler_params=pltpu.CompilerParams(
            dimension_semantics=("parallel",),         # megacore sharding on v7x
            vmem_limit_bytes=vmem_limit),
        cost_estimate=cost,
    )(xp, wm, params)

    if M_pad != M:
        out = out[:M]
    return out.reshape(B, Hp, Wp, E)     # free bitcast-reshape when M_pad == M


def _reference(x, w, b, gamma, beta, patch_size, eps=1e-5):
    # Pure-JAX reference: strided-conv-as-patch-matmul in f32, with the matmul
    # inputs rounded to bf16 to mirror the kernel's MXU bf16xbf16->f32 path.
    B, C, H, W = x.shape
    E = w.shape[0]
    P = patch_size
    Hp, Wp = H // P, W // P
    xp = x.reshape(B, C, Hp, P, Wp, P).transpose(0, 2, 4, 1, 3, 5)
    xp = xp.reshape(B * Hp * Wp, C * P * P)
    xb = xp.astype(jnp.bfloat16).astype(jnp.float32)
    wb = w.reshape(E, -1).T.astype(jnp.bfloat16).astype(jnp.float32)
    y = jnp.dot(xb, wb, precision=jax.lax.Precision.HIGHEST) + b
    if gamma is not None:
        mu = y.mean(-1, keepdims=True)
        var = ((y - mu) ** 2).mean(-1, keepdims=True)
        y = (y - mu) / jnp.sqrt(var + eps) * gamma + beta
    return y.reshape(B, Hp, Wp, E)


if __name__ == "__main__":
    key = jax.random.PRNGKey(0)
    k1, k2, k3, k4, k5 = jax.random.split(key, 5)

    B, C, H, W = 2, 4, 16, 16
    P, E = 4, 32

    x = jax.random.normal(k1, (B, C, H, W), jnp.float32)
    w = jax.random.normal(k2, (E, C, P, P), jnp.float32) * 0.05   # Conv2d weight
    b = jax.random.normal(k3, (E,), jnp.float32) * 0.02           # Conv2d bias
    gamma = 1.0 + 0.1 * jax.random.normal(k4, (E,), jnp.float32)  # LN weight
    beta = 0.1 * jax.random.normal(k5, (E,), jnp.float32)         # LN bias

    # norm_layer = LayerNorm, default bf16 output
    y = patch_embed_2d(x, w, b, gamma, beta, patch_size=P)
    jax.block_until_ready(y)
    y_ref = _reference(x, w, b, gamma, beta, P)
    assert y.shape == (B, H // P, W // P, E)
    assert y.dtype == jnp.bfloat16
    err = float(jnp.max(jnp.abs(y.astype(jnp.float32) - y_ref)))
    assert err < 3e-2, err

    # norm_layer = LayerNorm, f32 output (tighter check of the f32 math path)
    y32 = patch_embed_2d(x, w, b, gamma, beta, patch_size=P,
                         out_dtype=jnp.float32)
    jax.block_until_ready(y32)
    err32 = float(jnp.max(jnp.abs(y32 - y_ref)))
    assert err32 < 2e-3, err32

    # norm_layer = None (module default), bf16 output
    y2 = patch_embed_2d(x, w, b, None, None, patch_size=P)
    jax.block_until_ready(y2)
    y2_ref = _reference(x, w, b, None, None, P)
    err2 = float(jnp.max(jnp.abs(y2.astype(jnp.float32) - y2_ref)))
    assert err2 < 3e-2, err2

    print("KERNEL_OK")
</pallas_src>

<mosaic_0001>
module attributes {stable_mosaic.version = 11 : i64} {
  func.func @_patch_embed_kernel(%arg0: i32, %arg1: memref<16x64xbf16, #tpu.memory_space<vmem>>, %arg2: memref<64x32xbf16, #tpu.memory_space<vmem>>, %arg3: memref<3x32xf32, #tpu.memory_space<vmem>>, %arg4: memref<16x32xbf16, #tpu.memory_space<vmem>>) attributes {dimension_semantics = [#tpu.dimension_semantics<parallel>], iteration_bounds = array<i64: 2>, scalar_prefetch = 0 : i64, scratch_operands = 0 : i64, tpu.core_type = #tpu.core_type<tc>, window_params = [{transform_indices = @transform_0, window_bounds = array<i64: 16, 64>}, {pipeline_mode = #tpu.pipeline_mode<synchronous>, transform_indices = @transform_1, window_bounds = array<i64: 64, 32>}, {pipeline_mode = #tpu.pipeline_mode<synchronous>, transform_indices = @transform_2, window_bounds = array<i64: 3, 32>}, {transform_indices = @transform_3, window_bounds = array<i64: 16, 32>}]} {
    %c0 = arith.constant 0 : index
    %c0_0 = arith.constant 0 : index
    %0 = vector.load %arg1[%c0, %c0_0] : memref<16x64xbf16, #tpu.memory_space<vmem>>, vector<16x64xbf16>
    %c0_1 = arith.constant 0 : index
    %c0_2 = arith.constant 0 : index
    %1 = vector.load %arg2[%c0_1, %c0_2] : memref<64x32xbf16, #tpu.memory_space<vmem>>, vector<64x32xbf16>
    %cst = arith.constant dense<0.000000e+00> : vector<16x32xf32>
    %2 = tpu.matmul %0, %1, %cst {dimension_numbers = #tpu.dot_dimension_numbers<[1], [0], [0], [1], [0, 0, 1, 1], [], []>} : vector<16x64xbf16>, vector<64x32xbf16>, vector<16x32xf32> -> vector<16x32xf32>
    %c0_3 = arith.constant 0 : index
    %c0_4 = arith.constant 0 : index
    %3 = vector.load %arg3[%c0_3, %c0_4] : memref<3x32xf32, #tpu.memory_space<vmem>>, vector<1x32xf32>
    %4 = vector.broadcast %3 : vector<1x32xf32> to vector<16x32xf32>
    %5 = arith.addf %2, %4 : vector<16x32xf32>
    %cst_5 = arith.constant dense<0.000000e+00> : vector<16xf32>
    %6 = vector.multi_reduction <add>, %5, %cst_5 [1] : vector<16x32xf32> to vector<16xf32>
    %7 = vector.shape_cast %6 : vector<16xf32> to vector<16x1xf32>
    %cst_6 = arith.constant 3.125000e-02 : f32
    %8 = vector.broadcast %cst_6 : f32 to vector<16x1xf32>
    %9 = arith.mulf %7, %8 : vector<16x1xf32>
    %10 = vector.broadcast %9 : vector<16x1xf32> to vector<16x32xf32>
    %11 = arith.subf %5, %10 : vector<16x32xf32>
    %12 = arith.mulf %11, %11 : vector<16x32xf32>
    %cst_7 = arith.constant dense<0.000000e+00> : vector<16xf32>
    %13 = vector.multi_reduction <add>, %12, %cst_7 [1] : vector<16x32xf32> to vector<16xf32>
    %14 = vector.shape_cast %13 : vector<16xf32> to vector<16x1xf32>
    %cst_8 = arith.constant 3.125000e-02 : f32
    %15 = vector.broadcast %cst_8 : f32 to vector<16x1xf32>
    %16 = arith.mulf %14, %15 : vector<16x1xf32>
    %cst_9 = arith.constant 9.99999974E-6 : f32
    %17 = vector.broadcast %cst_9 : f32 to vector<16x1xf32>
    %18 = arith.addf %16, %17 : vector<16x1xf32>
    %19 = math.rsqrt %18 : vector<16x1xf32>
    %20 = vector.broadcast %19 : vector<16x1xf32> to vector<16x32xf32>
    %21 = arith.mulf %11, %20 : vector<16x32xf32>
    %c1 = arith.constant 1 : index
    %c0_10 = arith.constant 0 : index
    %22 = vector.load %arg3[%c1, %c0_10] : memref<3x32xf32, #tpu.memory_space<vmem>>, vector<1x32xf32>
    %23 = vector.broadcast %22 : vector<1x32xf32> to vector<16x32xf32>
    %24 = arith.mulf %21, %23 : vector<16x32xf32>
    %c2 = arith.constant 2 : index
    %c0_11 = arith.constant 0 : index
    %25 = vector.load %arg3[%c2, %c0_11] : memref<3x32xf32, #tpu.memory_space<vmem>>, vector<1x32xf32>
    %26 = vector.broadcast %25 : vector<1x32xf32> to vector<16x32xf32>
    %27 = arith.addf %24, %26 : vector<16x32xf32>
    %28 = arith.truncf %27 : vector<16x32xf32> to vector<16x32xbf16>
    %c0_12 = arith.constant 0 : index
    %c0_13 = arith.constant 0 : index
    %29 = vector.load %arg4[%c0_12, %c0_13] : memref<16x32xbf16, #tpu.memory_space<vmem>>, vector<16x32xbf16>
    tpu.vector_store %arg4[%c0_12, %c0_13], %28 {strides = array<i32>} : memref<16x32xbf16, #tpu.memory_space<vmem>>, vector<16x32xbf16>,
    return
  }
  func.func @transform_0(%arg0: i32) -> (i32, i32) {
    %c0_i32 = arith.constant 0 : i32
    %c0_i32_0 = arith.constant 0 : i32
    return %arg0, %c0_i32 : i32, i32
  }
  func.func @transform_1(%arg0: i32) -> (i32, i32) {
    %c0_i32 = arith.constant 0 : i32
    %c0_i32_0 = arith.constant 0 : i32
    %c0_i32_1 = arith.constant 0 : i32
    return %c0_i32, %c0_i32_0 : i32, i32
  }
  func.func @transform_2(%arg0: i32) -> (i32, i32) {
    %c0_i32 = arith.constant 0 : i32
    %c0_i32_0 = arith.constant 0 : i32
    %c0_i32_1 = arith.constant 0 : i32
    return %c0_i32, %c0_i32_0 : i32, i32
  }
  func.func @transform_3(%arg0: i32) -> (i32, i32) {
    %c0_i32 = arith.constant 0 : i32
    %c0_i32_0 = arith.constant 0 : i32
    return %arg0, %c0_i32 : i32, i32
  }
}

</mosaic_0001>

<llo_original>
// kernel: tpu_custom_call.1
$region0: #{tpu_custom_call.1}
  #allocation0 [shape = 'u32[]', space=smem, size = 0x4, offset = 0x4, fixed_abs, tag = 'smem constant byte address 0x4 - core index']
  #allocation1 [shape = 'u32[72,128]{1,0:T(1,128)}', space=vmem, size = 0x9000, scoped, tag = 'internal scratch']
  %s0 = inlined_call_operand.vmem [shape: bf16[32,64], index: 0, kind: input, shape index: {}]
  %s1 = inlined_call_operand.vmem [shape: bf16[64,32], index: 1, kind: input, shape index: {}]
  %s2 = inlined_call_operand.vmem [shape: f32[3,32], index: 2, kind: input, shape index: {}]
  %s3 = inlined_call_operand.hbm [shape: bf16[32,32], index: 3, kind: output, shape index: {}]
  %s4 = sld [smem:[#allocation0]]
  $region45: #{tpu_custom_call.1} parent=0
    _
  %s6 = ssub.s32 1, %s4
  %s7 = scalar_select 0, %s6, %s4
  $region1: #{tpu_custom_call.1} parent=0
    #allocation2 [shape = 'u8[8192]{0}', space=vmem, size = 0x2000, scoped, tag = 'output window, operand 0']
    #allocation3 [shape = 's32[2]{0}', space=sflag, size = 0x8, scoped, tag = 'scoped memory for tpu_custom_call.1']
    %8 = vsyncpa [#allocation3], 0
    %s9 = scalar_lea.sflag [#allocation3], 1
    %10 = vsyncpa %s9, 0
    loop: start=0, step=1, limit=4
    $region2: #{tpu_custom_call.1} parent=1 // loop_pre_header
      _
    $region3: #{tpu_custom_call.1} parent=1 // loop_header
      %s12 = sphi 0, %s16
      %p13 = scmp.ge.s32.totalorder %s12, 4
      %s22 = sphi 0, %s24
      %s25 = sphi 0, %s22
      %s26 = sphi 0, %s25
      %s42 = sphi 0, %s26
      %s46 = sphi 0, %s46
      %s48 = sphi 0, %s46
      %s49 = sphi 0, %s48
      %s63 = sphi 0, %s49
      %s67 = sphi 0, %s67
      %s69 = sphi 0, %s67
      %s70 = sphi 0, %s69
      %s84 = sphi 0, %s70
      %s90 = sphi 0, %s92
      %s93 = sphi 0, %s90
      %s94 = sphi 0, %s93
      %s110 = sphi 0, %s94
    $region4: #{tpu_custom_call.1} parent=1 // loop_header_branch
      %15 = sbr.rel (%p13) target = $region8
    $region5: #{tpu_custom_call.1} parent=1 // loop_body
      %s17 = ssub.s32 %s12, 1
      %s18 = ssub.s32 %s12, 2
      %s19 = sadd.s32 %s12, 1
      %s20 = ssub.s32 %s12, %s19
      %p21 = scmp.eq.s32.totalorder %s20, 0
      %s23 = sadd.s32 %s22, 1
      %s24 = scalar_select %p21, %s22, %s23
      %p27 = pneg %p21
      %p28 = scmp.eq.s32.totalorder %s12, 1
      %p29 = por %p27, %p28
      %p30 = scmp.ne.s32.totalorder %s22, %s25
      %p31 = scmp.eq.s32.totalorder %s12, 0
      %p32 = por %p30, %p31
      %p33 = scmp.ne.s32.totalorder %s22, %s25
      %p34 = scmp.eq.s32.totalorder %s17, 1
      %p35 = por %p33, %p34
      %p36 = scmp.ne.s32.totalorder %s25, %s26
      %p37 = scmp.eq.s32.totalorder %s17, 0
      %p38 = por %p36, %p37
      %p39 = scmp.ne.s32.totalorder %s25, %s26
      %p40 = scmp.eq.s32.totalorder %s18, 1
      %p41 = por %p39, %p40
      %p43 = scmp.ne.s32.totalorder %s26, %s42
      %p44 = scmp.eq.s32.totalorder %s18, 0
      %p45 = por %p43, %p44
      %s47 = sadd.s32 %s46, 1
      %p50 = scmp.eq.s32.totalorder %s12, 1
      %p51 = scmp.ne.s32.totalorder %s46, %s48
      %p52 = scmp.eq.s32.totalorder %s12, 0
      %p53 = por %p51, %p52
      %p54 = scmp.ne.s32.totalorder %s46, %s48
      %p55 = scmp.eq.s32.totalorder %s17, 1
      %p56 = por %p54, %p55
      %p57 = scmp.ne.s32.totalorder %s48, %s49
      %p58 = scmp.eq.s32.totalorder %s17, 0
      %p59 = por %p57, %p58
      %p60 = scmp.ne.s32.totalorder %s48, %s49
      %p61 = scmp.eq.s32.totalorder %s18, 1
      %p62 = por %p60, %p61
      %p64 = scmp.ne.s32.totalorder %s49, %s63
      %p65 = scmp.eq.s32.totalorder %s18, 0
      %p66 = por %p64, %p65
      %s68 = sadd.s32 %s67, 1
      %p71 = scmp.eq.s32.totalorder %s12, 1
      %p72 = scmp.ne.s32.totalorder %s67, %s69
      %p73 = scmp.eq.s32.totalorder %s12, 0
      %p74 = por %p72, %p73
      %p75 = scmp.ne.s32.totalorder %s67, %s69
      %p76 = scmp.eq.s32.totalorder %s17, 1
      %p77 = por %p75, %p76
      %p78 = scmp.ne.s32.totalorder %s69, %s70
      %p79 = scmp.eq.s32.totalorder %s17, 0
      %p80 = por %p78, %p79
      %p81 = scmp.ne.s32.totalorder %s69, %s70
      %p82 = scmp.eq.s32.totalorder %s18, 1
      %p83 = por %p81, %p82
      %p85 = scmp.ne.s32.totalorder %s70, %s84
      %p86 = scmp.eq.s32.totalorder %s18, 0
      %p87 = por %p85, %p86
      %s88 = ssub.s32 %s12, %s19
      %p89 = scmp.eq.s32.totalorder %s88, 0
      %s91 = sadd.s32 %s90, 1
      %s92 = scalar_select %p89, %s90, %s91
      %p95 = pneg %p89
      %p96 = scmp.eq.s32.totalorder %s12, 1
      %p97 = por %p95, %p96
      %p98 = scmp.ne.s32.totalorder %s90, %s93
      %p99 = scmp.eq.s32.totalorder %s12, 0
      %p100 = por %p98, %p99
      %p101 = scmp.ne.s32.totalorder %s90, %s93
      %p102 = scmp.eq.s32.totalorder %s17, 1
      %p103 = por %p101, %p102
      %p104 = scmp.ne.s32.totalorder %s93, %s94
      %p105 = scmp.eq.s32.totalorder %s17, 0
      %p106 = por %p104, %p105
      %p107 = scmp.ne.s32.totalorder %s93, %s94
      %p108 = scmp.eq.s32.totalorder %s18, 1
      %p109 = por %p107, %p108
      %p111 = scmp.ne.s32.totalorder %s94, %s110
      %p112 = scmp.eq.s32.totalorder %s18, 0
      %p113 = por %p111, %p112
      %p114 = scmp.le.s32.totalorder 1, %s12
      %p115 = scmp.lt.s32.totalorder %s12, 3
      %p116 = pnand %p114, %p115
      %p117 = pneg %p116
      // Predicated region
      $region9: #{tpu_custom_call.1} parent=5 // pred_check
        _
      $region10: #{tpu_custom_call.1} parent=5 // pred_check_branch
        %119 = sbr.rel (%p116) target = $region12
      $region11: #{tpu_custom_call.1} parent=5 // pred_region
        %s120 = ssub.s32 %s12, 1
        // Predicated region
        $region13: #{tpu_custom_call.1} parent=11 // pred_check
          %p121 = pneg %p59
        $region14: #{tpu_custom_call.1} parent=11 // pred_check_branch
          %123 = sbr.rel (%p121) target = $region16
        $region15: #{tpu_custom_call.1} parent=11 // pred_region
          _
        $region16: #{tpu_custom_call.1} parent=11 // pred_fallthru
          _
        // Predicated region
        $region17: #{tpu_custom_call.1} parent=11 // pred_check
          %p124 = pneg %p80
        $region18: #{tpu_custom_call.1} parent=11 // pred_check_branch
          %126 = sbr.rel (%p124) target = $region20
        $region19: #{tpu_custom_call.1} parent=11 // pred_region
          _
        $region20: #{tpu_custom_call.1} parent=11 // pred_fallthru
          _
      $region12: #{tpu_custom_call.1} parent=5 // pred_fallthru
        _
      %p127 = scmp.lt.s32.totalorder %s12, 2
      // Predicated region
      $region21: #{tpu_custom_call.1} parent=5 // pred_check
        %p128 = pneg %p127
      $region22: #{tpu_custom_call.1} parent=5 // pred_check_branch
        %130 = sbr.rel (%p128) target = $region24
      $region23: #{tpu_custom_call.1} parent=5 // pred_region
        // Predicated region
        $region25: #{tpu_custom_call.1} parent=23 // pred_check
          %p131 = pneg %p32
        $region26: #{tpu_custom_call.1} parent=23 // pred_check_branch
          %133 = sbr.rel (%p131) target = $region28
        $region27: #{tpu_custom_call.1} parent=23 // pred_region
          %s134 = smul.u32 2, %s12
          %p135 = scmp.lt.s32.totalorder %s134, 3
          %s136 = scalar_select %p135, %s134, 3
          %s137 = smul.addr %s136, 4
          %s138 = scalar_lea.vmem %s0, %s137
          %s139 = smul.u32 2, %s12
        $region28: #{tpu_custom_call.1} parent=23 // pred_fallthru
          _
      $region24: #{tpu_custom_call.1} parent=5 // pred_fallthru
        _
      %p140 = scmp.le.s32.totalorder 1, %s12
      %p141 = scmp.lt.s32.totalorder %s12, 3
      %p142 = pnand %p140, %p141
      %p143 = pneg %p142
      // Predicated region
      $region29: #{tpu_custom_call.1} parent=5 // pred_check
        _
      $region30: #{tpu_custom_call.1} parent=5 // pred_check_branch
        %145 = sbr.rel (%p142) target = $region32
      $region31: #{tpu_custom_call.1} parent=5 // pred_region
        %s146 = ssub.s32 %s12, 1
        %s147 = smul.u32 2, %s17
        %p148 = scmp.lt.s32.totalorder %s147, 3
        %s149 = scalar_select %p148, %s147, 3
        %s150 = smul.addr %s149, 4
        %s151 = scalar_lea.vmem %s0, %s150
        %p152 = pneg %p38
        %p153 = pneg %p35
        %p154 = pneg %p59
        %p155 = pneg %p56
        %p156 = pneg %p80
        %p157 = pneg %p77
        %p158 = pneg %p106
        %p159 = pneg %p103
        %s160 = sand.u32 %s93, 1
        %s161 = scalar_lea.sflag [#allocation3], %s160
        %s162 = sand.u32 %s93, 1
        %s163 = smul.addr %s162, 8
        %s164 = scalar_lea.vmem [#allocation2], %s163
        %s165 = smul.u32 2, %s17
        %p166 = scmp.lt.s32.totalorder %s165, 3
        %s167 = scalar_select %p166, %s165, 3
        %s168 = smul.addr %s167, 4
        %s169 = scalar_lea.vmem %s0, %s168
        %s170 = smul.u32 2, %s17
        %s171 = smul.u32 2, %s17
        %v173 = vld [vmem:[%s169] sm:$0xf]
        %v174 = vld [vmem:[%s169 + $0x4] sm:$0xf]
        %v175 = vld [vmem:[%s1] sm:$0xf]
        %v176 = vld [vmem:[%s1 + $0x4] sm:$0xf]
        %v177 = vld [vmem:[%s1 + $0x8] sm:$0xf]
        %v178 = vld [vmem:[%s1 + $0xc] sm:$0xf]
        %v179 = vld [vmem:[%s1 + $0x10] sm:$0xf]
        %v180 = vld [vmem:[%s1 + $0x14] sm:$0xf]
        %v181 = vld [vmem:[%s1 + $0x18] sm:$0xf]
        %v182 = vld [vmem:[%s1 + $0x1c] sm:$0xf]
        %v183 = vld [vmem:[%s2] sm:$0x1]
        %v184 = vperm.slane %v183, 0
        %v187 = vunpack.c.l.b16 %v173
        %v188 = vunpack.c.l.b16 %v174
        %v189 = vpack.c.b16 %v188, %v187
        %v198 = vunpack.c.l.b16 %v175
        %v199 = vunpack.c.l.b16 %v176
        %v200 = vunpack.c.l.b16 %v177
        %v201 = vunpack.c.l.b16 %v178
        %v202 = vunpack.c.l.b16 %v179
        %v203 = vunpack.c.l.b16 %v180
        %v204 = vunpack.c.l.b16 %v181
        %v205 = vunpack.c.l.b16 %v182
        %v206 = vpack.c.b16 %v199, %v198
        %v207 = vpack.c.b16 %v201, %v200
        %v208 = vpack.c.b16 %v203, %v202
        %v209 = vpack.c.b16 %v205, %v204
        %vm214 = vcmask 523264
        %v216 = vsel %vm214, %v189, 0
        %218 = vmatpush.bf16.msra.mxu0 0
        %219 = vmatpush.bf16.msra.mxu0 0
        %220 = vmatpush.bf16.msra.mxu0 0
        %221 = vmatpush.bf16.msra.mxu0 0
        %222 = vmatpush.bf16.msra.mxu0 %v209
        %223 = vmatpush.bf16.msra.mxu0 %v208
        %224 = vmatpush.bf16.msra.mxu0 %v207
        %225 = vmatpush.bf16.msra.mxu0 %v206
        %226 = vmatmul.bf16.gmra.mxu0 %v216
        %v227 = vpop.f32.mrf.mxu0
        %v228 = vadd.f32 %v184, %v227
        %v229 = vpop.f32.mrf.mxu0
        %v230 = vadd.f32 %v184, %v229
        %231 = vdwg.mxu0
        %vm232 = vcmask 261120
        %v233 = vsel %vm232, %v228, 0.0
        %234 = vadd.xlane.f32.xlu0 %v233
        %v235 = vpop.xlane.xlu0 %234
        %v236 = vsel %vm232, %v230, 0.0
        %237 = vadd.xlane.f32.xlu0 %v236
        %v238 = vpop.xlane.xlu0 %237
        %v239 = vmul.f32 %v235, 0.03125
        %v240 = vmul.f32 %v238, 0.03125
        %v241 = vsub.f32 %v228, %v239
        %v242 = vsub.f32 %v230, %v240
        %v243 = vmul.f32 %v241, %v241
        %v244 = vmul.f32 %v242, %v242
        %v245 = vsel %vm232, %v243, 0.0
        %246 = vadd.xlane.f32.xlu0 %v245
        %v247 = vpop.xlane.xlu0 %246
        %v248 = vsel %vm232, %v244, 0.0
        %249 = vadd.xlane.f32.xlu0 %v248
        %v250 = vpop.xlane.xlu0 %249
        %v251 = vmul.f32 %v247, 0.03125
        %v252 = vmul.f32 %v250, 0.03125
        %v253 = vadd.f32 %v251, 1e-05
        %v254 = vadd.f32 %v252, 1e-05
        %v255 = vrsqrt.pop %v253
        %v256 = vmul.f32 %v255, %v253
        %v257 = vmul.f32 %v256, %v255
        %v258 = vmul.f32 0.5, %v257
        %v259 = vsub.f32 1.5, %v258
        %v260 = vmul.f32 %v255, %v259
        %vm261 = vweird.f32 %v253
        %vm262 = vweird.f32 %v255
        %vm263 = vmor %vm261, %vm262
        %v264 = vsel %vm263, %v255, %v260
        %v265 = vrsqrt.pop %v254
        %v266 = vmul.f32 %v265, %v254
        %v267 = vmul.f32 %v266, %v265
        %v268 = vmul.f32 0.5, %v267
        %v269 = vsub.f32 1.5, %v268
        %v270 = vmul.f32 %v265, %v269
        %vm271 = vweird.f32 %v254
        %vm272 = vweird.f32 %v265
        %vm273 = vmor %vm271, %vm272
        %v274 = vsel %vm273, %v265, %v270
        %v275 = vmul.f32 %v241, %v264
        %v276 = vmul.f32 %v242, %v274
        %v277 = vld [vmem:[%s2 + $0x1] sm:$0x1]
        %v278 = vperm.slane %v277, 0
        %v279 = vmul.f32 %v275, %v278
        %v280 = vmul.f32 %v276, %v278
        %v281 = vld [vmem:[%s2 + $0x2] sm:$0x1]
        %v282 = vperm.slane %v281, 0
        %v283 = vadd.f32 %v279, %v282
        %v284 = vadd.f32 %v280, %v282
        %v285 = vpack.c.bf16 %v283, %v283
        %v286 = vpack.c.bf16 %v284, %v284
        %vm287 = vcmask 257024
        %288 = vst.msk [vmem:[%s164] sm:$0xf] %vm287, %v285
        %289 = vst.msk [vmem:[%s164 + $0x4] sm:$0xf] %vm287, %v286
        %s290 = sand.u32 %s93, 1
        %s291 = scalar_lea.sflag [#allocation3], %s290
        %s292 = sand.u32 %s93, 1
        %s293 = smul.addr %s292, 8
        %s294 = scalar_lea.vmem [#allocation2], %s293
        // Predicated region
        $region33: #{tpu_custom_call.1} parent=31 // pred_check
          %p295 = pneg %p103
        $region34: #{tpu_custom_call.1} parent=31 // pred_check_branch
          %297 = sbr.rel (%p295) target = $region36
        $region35: #{tpu_custom_call.1} parent=31 // pred_region
          %s298 = smul.u32 2, %s17
          %300 = vsyncadd %s291, 0
          %s301 = smul.addr %s298, 4
          %s302 = scalar_lea.hbm %s3, %s301
          %s303 = sshll.u32 %s294, 4
          %s304 = int_to_ptr.vmem [resolvable:$true] %s303
          %s305 = sshll.u32 %s302, 4
          %s306 = int_to_ptr.hbm [resolvable:$true] %s305
          %311 = dma.vmem_to_hbm [thread:$0]  %s304, 128, %s306, %s291, 64, 64, 4
        $region36: #{tpu_custom_call.1} parent=31 // pred_fallthru
          _
      $region32: #{tpu_custom_call.1} parent=5 // pred_fallthru
        _
      %p312 = scmp.le.s32.totalorder 2, %s12
      // Predicated region
      $region37: #{tpu_custom_call.1} parent=5 // pred_check
        %p313 = pneg %p312
      $region38: #{tpu_custom_call.1} parent=5 // pred_check_branch
        %315 = sbr.rel (%p313) target = $region40
      $region39: #{tpu_custom_call.1} parent=5 // pred_region
        %s316 = ssub.s32 %s12, 2
        // Predicated region
        $region41: #{tpu_custom_call.1} parent=39 // pred_check
          %p317 = pneg %p109
        $region42: #{tpu_custom_call.1} parent=39 // pred_check_branch
          %319 = sbr.rel (%p317) target = $region44
        $region43: #{tpu_custom_call.1} parent=39 // pred_region
          %s320 = sand.u32 %s94, 1
          %s321 = scalar_lea.sflag [#allocation3], %s320
          %s322 = sand.u32 %s94, 1
          %s323 = smul.addr %s322, 8
          %s324 = scalar_lea.vmem [#allocation2], %s323
          %326 = dma.done %s321, 128
        $region44: #{tpu_custom_call.1} parent=39 // pred_fallthru
          _
      $region40: #{tpu_custom_call.1} parent=5 // pred_fallthru
        _
    $region6: #{tpu_custom_call.1} parent=1 // loop_footer
      %s16 = sadd.s32 1, %s12
    $region7: #{tpu_custom_call.1} parent=1 // loop_footer_branch
      %11 = sbr.rel target = $region3
    $region8: #{tpu_custom_call.1} parent=1 // loop_exit
      _
    %327 = vsyncpa [#allocation3], 1
    %s328 = scalar_lea.sflag [#allocation3], 1
    %329 = vsyncpa %s328, 1

</llo_original>
